<compile_context>
chip_gen: v5e
topology: v5e:2x2
jax: 0.10.0
libtpu: 0.0.40
codegen_flags: <defaults>
</compile_context>

<pallas_src>
import jax
import jax.numpy as jnp
from jax import lax
from jax.experimental import pallas as pl
from jax.experimental.pallas import tpu as pltpu

DIM_X = 2
_LANE = 128


def _linsys_kernel(ab_ref, x_ref, u_ref, dxdt_ref, fx_ref):
    """Interleaved-layout kernel (pure VPU/XLU).

    ab_ref : SMEM (8,) f32 -> [a00, a01, a10, a11, b00, b01, b10, b11]
    x_ref  : VMEM (tr, 128) state slab; flat element p = 128*row + col holds
             component (p % 2) of batch element (p // 2).
    u_ref  : VMEM (tr, 128) control slab, same layout.
    dxdt_ref, fx_ref : VMEM (tr, 128) outputs, same layout.
    """
    x = x_ref[...].astype(jnp.float32)
    u = u_ref[...].astype(jnp.float32)
    rows, cols = x.shape

    col = lax.broadcasted_iota(jnp.int32, (rows, cols), 1)
    is_c0 = (col & 1) == 0  # lane holds component 0 of its (x0, x1) pair

    # Adjacent-lane swap: partner[c] = v[c+1] for even c, v[c-1] for odd c.
    #   roll(v, 1)        -> out[c] = v[c-1]
    #   roll(v, cols - 1) -> out[c] = v[c+1]
    # Circular wrap lanes are never selected thanks to the parity mask, and
    # component pairs never straddle a row because `cols` is even.
    def _partner(v):
        return jnp.where(is_c0, pltpu.roll(v, cols - 1, 1), pltpu.roll(v, 1, 1))

    x_sw = _partner(x)
    u_sw = _partner(u)

    a00, a01, a10, a11 = ab_ref[0], ab_ref[1], ab_ref[2], ab_ref[3]
    b00, b01, b10, b11 = ab_ref[4], ab_ref[5], ab_ref[6], ab_ref[7]

    # Per-lane coefficients of the 2x2 matrices in the interleaved layout.
    a_self = jnp.where(is_c0, a00, a11)
    a_swap = jnp.where(is_c0, a01, a10)
    b_self = jnp.where(is_c0, b00, b11)
    b_swap = jnp.where(is_c0, b01, b10)

    fx = a_self * x + a_swap * x_sw
    dxdt = fx + b_self * u + b_swap * u_sw

    fx_ref[...] = fx.astype(fx_ref.dtype)
    dxdt_ref[...] = dxdt.astype(dxdt_ref.dtype)


def _round_up(n, m):
    return ((n + m - 1) // m) * m


def _to_slab(arr, padded_flat, rows):
    """Row-major (batch, 2) -> (rows, 128) interleaved slab (order-preserving)."""
    flat = arr.reshape(-1)
    if flat.shape[0] != padded_flat:
        flat = jnp.pad(flat, (0, padded_flat - flat.shape[0]))
    return flat.reshape(rows, _LANE)


def linear_system_forward(xe, ue, A, B, *, block_rows=2048):
    """Pallas-backed forward pass. Returns (dxdt, fx, gx)."""
    batch = xe.shape[0]
    out_dtype = xe.dtype

    # Only the first DIM_X state columns participate.  Free when dim_xe == 2;
    # otherwise a single strided-slice pass (unavoidable without a gather).
    x2 = xe[:, :DIM_X]

    flat = batch * DIM_X
    padded_flat = _round_up(flat, _LANE)   # pad elided when batch % 64 == 0
    rows = padded_flat // _LANE

    x_slab = _to_slab(x2, padded_flat, rows)
    u_slab = _to_slab(ue, padded_flat, rows)

    # Row tile: take all rows in one block, or a multiple-of-8 tile when the
    # slab is larger (Pallas masks the ragged last block automatically).
    block_rows = max(8, (int(block_rows) // 8) * 8)
    tr = rows if rows <= block_rows else block_rows
    grid = (pl.cdiv(rows, tr),)

    # A and B enter as 8 scalars through SMEM (no padded VMEM tile for 2x2).
    ab = jnp.concatenate(
        [jnp.asarray(A, jnp.float32).reshape(-1),
         jnp.asarray(B, jnp.float32).reshape(-1)])

    slab_spec = pl.BlockSpec((tr, _LANE), lambda i: (i, 0))

    dxdt_slab, fx_slab = pl.pallas_call(
        _linsys_kernel,
        out_shape=(
            jax.ShapeDtypeStruct((rows, _LANE), out_dtype),   # dxdt slab
            jax.ShapeDtypeStruct((rows, _LANE), out_dtype),   # fx slab
        ),
        grid=grid,
        in_specs=[
            pl.BlockSpec(memory_space=pltpu.MemorySpace.SMEM),   # A|B scalars
            slab_spec,                                           # x slab tile
            slab_spec,                                           # u slab tile
        ],
        out_specs=(slab_spec, slab_spec),
        compiler_params=pltpu.CompilerParams(
            # TODO(synk): switch to pltpu.CORE_PARALLEL on v7x (2 TCs) and/or
            # pipeline_mode=pl.Buffered(3) once validated on hardware; both
            # are modest wins on top of the large-tile, copy-free layout.
            dimension_semantics=("parallel",),
        ),
    )(ab, x_slab, u_slab)

    def _from_slab(slab):
        out = slab.reshape(-1)
        if padded_flat != flat:
            out = out[:flat]
        return out.reshape(batch, DIM_X)

    dxdt = _from_slab(dxdt_slab)
    fx = _from_slab(fx_slab)
    # gx is a pure broadcast of B; keep it lazy (materializing it would write
    # batch*16 bytes to HBM -- about half the kernel's total traffic).
    gx = jnp.broadcast_to(jnp.asarray(B, out_dtype)[None, :, :],
                          (batch, DIM_X, DIM_X))
    return dxdt, fx, gx


def _reference(xe, ue, A, B):
    x = xe[..., :DIM_X]
    fx = jnp.einsum("ij,bj->bi", A, x)
    dxdt = fx + jnp.einsum("ij,bj->bi", B, ue)
    gx = jnp.broadcast_to(B[None, :, :], (xe.shape[0], DIM_X, DIM_X))
    return dxdt, fx, gx


if __name__ == "__main__":
    # Deterministic parameters, as defined in LinearSystemModel.__init__
    A = jnp.array([[0.0, 1.0], [-1.0, 0.5]], dtype=jnp.float32)
    B = jnp.eye(2, dtype=jnp.float32)

    fwd = jax.jit(linear_system_forward, static_argnames=("block_rows",))

    key = jax.random.PRNGKey(0)
    k1, k2, k3, k4 = jax.random.split(key, 4)

    # Case 1: tiny batch with extra trailing state dims (dim_xe > 2).
    xe1 = jax.random.normal(k1, (8, 4), dtype=jnp.float32)
    ue1 = jax.random.normal(k2, (8, DIM_X), dtype=jnp.float32)
    out1 = fwd(xe1, ue1, A, B)
    jax.block_until_ready(out1)

    # Case 2: larger batch with a small block_rows override to exercise the
    # multi-step pipelined grid with a ragged (masked) last block.
    xe2 = jax.random.normal(k3, (1200, 3), dtype=jnp.float32)
    ue2 = jax.random.normal(k4, (1200, DIM_X), dtype=jnp.float32)
    out2 = fwd(xe2, ue2, A, B, block_rows=8)
    jax.block_until_ready(out2)

    for xe, ue, outs in ((xe1, ue1, out1), (xe2, ue2, out2)):
        dxdt, fx, gx = outs
        dxdt_r, fx_r, gx_r = _reference(xe, ue, A, B)
        b = xe.shape[0]
        assert dxdt.shape == (b, DIM_X) and fx.shape == (b, DIM_X)
        assert gx.shape == (b, DIM_X, DIM_X)
        assert jnp.allclose(dxdt, dxdt_r, atol=1e-5), "dxdt mismatch"
        assert jnp.allclose(fx, fx_r, atol=1e-5), "fx mismatch"
        assert jnp.allclose(gx, gx_r, atol=1e-5), "gx mismatch"

    print("KERNEL_OK")
</pallas_src>

<mosaic_0001>
module attributes {stable_mosaic.version = 11 : i64} {
  func.func @_linsys_kernel(%arg0: i32, %arg1: memref<8xf32, #tpu.memory_space<smem>>, %arg2: memref<1x128xf32, #tpu.memory_space<vmem>>, %arg3: memref<1x128xf32, #tpu.memory_space<vmem>>, %arg4: memref<1x128xf32, #tpu.memory_space<vmem>>, %arg5: memref<1x128xf32, #tpu.memory_space<vmem>>) attributes {dimension_semantics = [#tpu.dimension_semantics<parallel>], iteration_bounds = array<i64: 1>, scalar_prefetch = 0 : i64, scratch_operands = 0 : i64, tpu.core_type = #tpu.core_type<tc>, window_params = [{transform_indices = @transform_0, window_bounds = array<i64: 8>}, {transform_indices = @transform_1, window_bounds = array<i64: 1, 128>}, {transform_indices = @transform_2, window_bounds = array<i64: 1, 128>}, {transform_indices = @transform_3, window_bounds = array<i64: 1, 128>}, {transform_indices = @transform_4, window_bounds = array<i64: 1, 128>}]} {
    %c0 = arith.constant 0 : index
    %c0_0 = arith.constant 0 : index
    %0 = vector.load %arg2[%c0, %c0_0] : memref<1x128xf32, #tpu.memory_space<vmem>>, vector<1x128xf32>
    %c0_1 = arith.constant 0 : index
    %c0_2 = arith.constant 0 : index
    %1 = vector.load %arg3[%c0_1, %c0_2] : memref<1x128xf32, #tpu.memory_space<vmem>>, vector<1x128xf32>
    %2 = tpu.iota {dimensions = array<i32: 1>} : vector<1x128xi32>
    %c1_i32 = arith.constant 1 : i32
    %3 = vector.broadcast %c1_i32 : i32 to vector<1x128xi32>
    %4 = arith.andi %2, %3 : vector<1x128xi32>
    %c0_i32 = arith.constant 0 : i32
    %5 = vector.broadcast %c0_i32 : i32 to vector<1x128xi32>
    %6 = arith.cmpi eq, %4, %5 : vector<1x128xi32>
    %c127_i32 = arith.constant 127 : i32
    %7 = tpu.dynamic_rotate %0 by %c127_i32 dim 1 : vector<1x128xf32>, i32 -> vector<1x128xf32>
    %c1_i32_3 = arith.constant 1 : i32
    %8 = tpu.dynamic_rotate %0 by %c1_i32_3 dim 1 : vector<1x128xf32>, i32 -> vector<1x128xf32>
    %9 = arith.select %6, %7, %8 : vector<1x128xi1>, vector<1x128xf32>
    %c127_i32_4 = arith.constant 127 : i32
    %10 = tpu.dynamic_rotate %1 by %c127_i32_4 dim 1 : vector<1x128xf32>, i32 -> vector<1x128xf32>
    %c1_i32_5 = arith.constant 1 : i32
    %11 = tpu.dynamic_rotate %1 by %c1_i32_5 dim 1 : vector<1x128xf32>, i32 -> vector<1x128xf32>
    %12 = arith.select %6, %10, %11 : vector<1x128xi1>, vector<1x128xf32>
    %c0_6 = arith.constant 0 : index
    %13 = memref.load %arg1[%c0_6] : memref<8xf32, #tpu.memory_space<smem>>
    %c1 = arith.constant 1 : index
    %14 = memref.load %arg1[%c1] : memref<8xf32, #tpu.memory_space<smem>>
    %c2 = arith.constant 2 : index
    %15 = memref.load %arg1[%c2] : memref<8xf32, #tpu.memory_space<smem>>
    %c3 = arith.constant 3 : index
    %16 = memref.load %arg1[%c3] : memref<8xf32, #tpu.memory_space<smem>>
    %c4 = arith.constant 4 : index
    %17 = memref.load %arg1[%c4] : memref<8xf32, #tpu.memory_space<smem>>
    %c5 = arith.constant 5 : index
    %18 = memref.load %arg1[%c5] : memref<8xf32, #tpu.memory_space<smem>>
    %c6 = arith.constant 6 : index
    %19 = memref.load %arg1[%c6] : memref<8xf32, #tpu.memory_space<smem>>
    %c7 = arith.constant 7 : index
    %20 = memref.load %arg1[%c7] : memref<8xf32, #tpu.memory_space<smem>>
    %21 = vector.broadcast %13 : f32 to vector<1x128xf32>
    %22 = vector.broadcast %16 : f32 to vector<1x128xf32>
    %23 = arith.select %6, %21, %22 : vector<1x128xi1>, vector<1x128xf32>
    %24 = vector.broadcast %14 : f32 to vector<1x128xf32>
    %25 = vector.broadcast %15 : f32 to vector<1x128xf32>
    %26 = arith.select %6, %24, %25 : vector<1x128xi1>, vector<1x128xf32>
    %27 = vector.broadcast %17 : f32 to vector<1x128xf32>
    %28 = vector.broadcast %20 : f32 to vector<1x128xf32>
    %29 = arith.select %6, %27, %28 : vector<1x128xi1>, vector<1x128xf32>
    %30 = vector.broadcast %18 : f32 to vector<1x128xf32>
    %31 = vector.broadcast %19 : f32 to vector<1x128xf32>
    %32 = arith.select %6, %30, %31 : vector<1x128xi1>, vector<1x128xf32>
    %33 = arith.mulf %23, %0 : vector<1x128xf32>
    %34 = arith.mulf %26, %9 : vector<1x128xf32>
    %35 = arith.addf %33, %34 : vector<1x128xf32>
    %36 = arith.mulf %29, %1 : vector<1x128xf32>
    %37 = arith.addf %35, %36 : vector<1x128xf32>
    %38 = arith.mulf %32, %12 : vector<1x128xf32>
    %39 = arith.addf %37, %38 : vector<1x128xf32>
    %c0_7 = arith.constant 0 : index
    %c0_8 = arith.constant 0 : index
    %40 = vector.load %arg5[%c0_7, %c0_8] : memref<1x128xf32, #tpu.memory_space<vmem>>, vector<1x128xf32>
    tpu.vector_store %arg5[%c0_7, %c0_8], %35 {strides = array<i32>} : memref<1x128xf32, #tpu.memory_space<vmem>>, vector<1x128xf32>,
    %c0_9 = arith.constant 0 : index
    %c0_10 = arith.constant 0 : index
    %41 = vector.load %arg4[%c0_9, %c0_10] : memref<1x128xf32, #tpu.memory_space<vmem>>, vector<1x128xf32>
    tpu.vector_store %arg4[%c0_9, %c0_10], %39 {strides = array<i32>} : memref<1x128xf32, #tpu.memory_space<vmem>>, vector<1x128xf32>,
    return
  }
  func.func @transform_0(%arg0: i32) -> i32 {
    %c0_i32 = arith.constant 0 : i32
    %c0_i32_0 = arith.constant 0 : i32
    return %c0_i32 : i32
  }
  func.func @transform_1(%arg0: i32) -> (i32, i32) {
    %c0_i32 = arith.constant 0 : i32
    %c0_i32_0 = arith.constant 0 : i32
    return %arg0, %c0_i32 : i32, i32
  }
  func.func @transform_2(%arg0: i32) -> (i32, i32) {
    %c0_i32 = arith.constant 0 : i32
    %c0_i32_0 = arith.constant 0 : i32
    return %arg0, %c0_i32 : i32, i32
  }
  func.func @transform_3(%arg0: i32) -> (i32, i32) {
    %c0_i32 = arith.constant 0 : i32
    %c0_i32_0 = arith.constant 0 : i32
    return %arg0, %c0_i32 : i32, i32
  }
  func.func @transform_4(%arg0: i32) -> (i32, i32) {
    %c0_i32 = arith.constant 0 : i32
    %c0_i32_0 = arith.constant 0 : i32
    return %arg0, %c0_i32 : i32, i32
  }
}

</mosaic_0001>

<llo_original>
// kernel: linear_system_forward.1
$region0: #{linear_system_forward.1}
  #allocation0 [shape = 'u32[]', space=smem, size = 0x4, offset = 0x4, fixed_abs, tag = 'smem constant byte address 0x4 - core index']
  #allocation1 [shape = 'u32[72,128]{1,0:T(1,128)}', space=vmem, size = 0x9000, scoped, tag = 'internal scratch']
  %s0 = inlined_call_operand.vmem [shape: f32[8], index: 0, kind: input, shape index: {}]
  %s1 = inlined_call_operand.vmem [shape: f32[1,128], index: 1, kind: input, shape index: {}]
  %s2 = inlined_call_operand.vmem [shape: f32[1,128], index: 2, kind: input, shape index: {}]
  %s3 = inlined_call_operand.vmem [shape: f32[1,128], index: 3, kind: output, shape index: {0}]
  %s4 = inlined_call_operand.vmem [shape: f32[1,128], index: 4, kind: output, shape index: {1}]
  %5 = xla_tuple %s3, %s4
  %s6 = sld [smem:[#allocation0]]
  $region34: #{linear_system_forward.1} parent=0
    _
  %s8 = ssub.s32 1, %s6
  %s9 = scalar_select 0, %s8, %s6
  $region1: #{linear_system_forward.1} parent=0
    #allocation2 [shape = 'u8[512]{0}', space=smem, size = 0x200, scoped, tag = 'input window, operand 0, single buffered']
    #allocation3 [shape = 's32[1]{0}', space=sflag, size = 0x4, scoped, tag = 'scoped memory for linear_system_forward.1']
    %10 = vsyncpa [#allocation3], 0
    // Predicated region
    $region2: #{linear_system_forward.1} parent=1 // pred_check
      _
    $region3: #{linear_system_forward.1} parent=1 // pred_check_branch
      %12 = sbr.rel (0) target = $region5
    $region4: #{linear_system_forward.1} parent=1 // pred_region
      %14 = vsyncadd [#allocation3], 0
      %s16 = sshll.u32 %s0, 4
      %s17 = int_to_ptr.vmem [resolvable:$true] %s16
      %19 = dma.vmem_to_smem %s17, 16, [#allocation2], [#allocation3]
    $region5: #{linear_system_forward.1} parent=1 // pred_fallthru
      _
    // Predicated region
    $region6: #{linear_system_forward.1} parent=1 // pred_check
      _
    $region7: #{linear_system_forward.1} parent=1 // pred_check_branch
      %21 = sbr.rel (0) target = $region9
    $region8: #{linear_system_forward.1} parent=1 // pred_region
      _
    $region9: #{linear_system_forward.1} parent=1 // pred_fallthru
      _
    // Predicated region
    $region10: #{linear_system_forward.1} parent=1 // pred_check
      _
    $region11: #{linear_system_forward.1} parent=1 // pred_check_branch
      %23 = sbr.rel (0) target = $region13
    $region12: #{linear_system_forward.1} parent=1 // pred_region
      _
    $region13: #{linear_system_forward.1} parent=1 // pred_fallthru
      _
    // Predicated region
    $region14: #{linear_system_forward.1} parent=1 // pred_check
      _
    $region15: #{linear_system_forward.1} parent=1 // pred_check_branch
      %25 = sbr.rel (0) target = $region17
    $region16: #{linear_system_forward.1} parent=1 // pred_region
      %27 = dma.done [#allocation3], 16
    $region17: #{linear_system_forward.1} parent=1 // pred_fallthru
      _
    %28 = sfence
    %v29 = vld [vmem:[%s1] sm:$0x1]
    %v30 = vld [vmem:[%s2] sm:$0x1]
    %v31 = vlaneseq
    %v32 = vand.u32 %v31, 127
    %v33 = vand.u32 %v32, 1
    %vm34 = vcmp.eq.s32.totalorder %v33, 0
    %35 = vrot.lane.b32.xlu0 %v29, 127
    %v36 = vpop.permute.xlu0 %35
    %37 = vrot.lane.b32.xlu0 %v29, 1
    %v38 = vpop.permute.xlu0 %37
    %v39 = vsel %vm34, %v36, %v38
    %40 = vrot.lane.b32.xlu0 %v30, 127
    %v41 = vpop.permute.xlu0 %40
    %42 = vrot.lane.b32.xlu0 %v30, 1
    %v43 = vpop.permute.xlu0 %42
    %v44 = vsel %vm34, %v41, %v43
    %s45 = sld [smem:[#allocation2]]
    %s46 = sld [smem:[#allocation2 + $0x1]]
    %s47 = sld [smem:[#allocation2 + $0x2]]
    %s48 = sld [smem:[#allocation2 + $0x3]]
    %s49 = sld [smem:[#allocation2 + $0x4]]
    %s50 = sld [smem:[#allocation2 + $0x5]]
    %s51 = sld [smem:[#allocation2 + $0x6]]
    %s52 = sld [smem:[#allocation2 + $0x7]]
    %v53 = vstv %s45
    %v54 = vstv %s48
    %v55 = vsel %vm34, %v53, %v54
    %v56 = vstv %s46
    %v57 = vstv %s47
    %v58 = vsel %vm34, %v56, %v57
    %v59 = vstv %s49
    %v60 = vstv %s52
    %v61 = vsel %vm34, %v59, %v60
    %v62 = vstv %s50
    %v63 = vstv %s51
    %v64 = vsel %vm34, %v62, %v63
    %v65 = vmul.f32 %v55, %v29
    %v66 = vmul.f32 %v58, %v39
    %v67 = vadd.f32 %v65, %v66
    %v68 = vmul.f32 %v61, %v30
    %v69 = vadd.f32 %v67, %v68
    %v70 = vmul.f32 %v64, %v44
    %v71 = vadd.f32 %v69, %v70
    %72 = vst [vmem:[%s4] sm:$0x1] %v67
    %73 = vst [vmem:[%s3] sm:$0x1] %v71
    // Predicated region
    $region18: #{linear_system_forward.1} parent=1 // pred_check
      _
    $region19: #{linear_system_forward.1} parent=1 // pred_check_branch
      %75 = sbr.rel (0) target = $region21
    $region20: #{linear_system_forward.1} parent=1 // pred_region
      _
    $region21: #{linear_system_forward.1} parent=1 // pred_fallthru
      _
    // Predicated region
    $region22: #{linear_system_forward.1} parent=1 // pred_check
      _
    $region23: #{linear_system_forward.1} parent=1 // pred_check_branch
      %77 = sbr.rel (0) target = $region25
    $region24: #{linear_system_forward.1} parent=1 // pred_region
      _
    $region25: #{linear_system_forward.1} parent=1 // pred_fallthru
      _
    // Predicated region
    $region26: #{linear_system_forward.1} parent=1 // pred_check
      _
    $region27: #{linear_system_forward.1} parent=1 // pred_check_branch
      %79 = sbr.rel (0) target = $region29
    $region28: #{linear_system_forward.1} parent=1 // pred_region
      _
    $region29: #{linear_system_forward.1} parent=1 // pred_fallthru
      _
    // Predicated region
    $region30: #{linear_system_forward.1} parent=1 // pred_check
      _
    $region31: #{linear_system_forward.1} parent=1 // pred_check_branch
      %81 = sbr.rel (0) target = $region33
    $region32: #{linear_system_forward.1} parent=1 // pred_region
      _
    $region33: #{linear_system_forward.1} parent=1 // pred_fallthru
      _
    %82 = vsyncpa [#allocation3], 1

</llo_original>
